<compile_context>
chip_gen: v7x
topology: tpu7x:2x2x1
jax: 0.10.0
libtpu: 0.0.40
codegen_flags: <defaults>
</compile_context>

<pallas_src>
import jax
import jax.numpy as jnp
from jax.experimental import pallas as pl
from jax.experimental.pallas import tpu as pltpu


def residual_forward_kernel(state_ref, action_ref,
                            w1s_ref, w1a_ref, b1_ref,
                            w2_ref, b2_ref,
                            w3_ref, b3_ref,
                            w4_ref, b4_ref,
                            w5_ref, b5_ref,
                            out_ref):
    # Feature-major: activations are [features, batch_tile] (batch on the lane
    # axis -> dense vregs, unmasked stores).  Weights are [out, in].
    cdt = w2_ref.dtype  # compute dtype for MXU operands (bf16 or f32)

    # Layer 1: split matmul replaces cat([state, action], -1) @ W1.T
    # (no lane-axis concat / relayout), accumulating in f32 on the MXU.
    z = (jnp.dot(w1s_ref[...], state_ref[...].astype(cdt),
                 preferred_element_type=jnp.float32)
         + jnp.dot(w1a_ref[...], action_ref[...].astype(cdt),
                   preferred_element_type=jnp.float32)
         + b1_ref[...])
    h = jnp.tanh(z)  # tanh kept in f32 (v5e EUP has no bf16 path)

    def layer(w_ref, b_ref, x):
        return jnp.tanh(
            jnp.dot(w_ref[...], x.astype(cdt), preferred_element_type=jnp.float32)
            + b_ref[...])

    h = layer(w2_ref, b2_ref, h)
    h = layer(w3_ref, b3_ref, h)
    h = layer(w4_ref, b4_ref, h)

    y = (jnp.dot(w5_ref[...], h.astype(cdt), preferred_element_type=jnp.float32)
         + b5_ref[...])

    # Residual: re-read the (already VMEM-resident) state tile instead of keeping
    # a copy live across all five layers.
    out_ref[...] = (y + state_ref[...].astype(jnp.float32)).astype(out_ref.dtype)


def _vmem_cap_bytes():
    """Generation-aware VMEM cap (leave ~20% headroom for compiler scratch)."""
    try:
        cap = int(pltpu.get_tpu_info().vmem_capacity_bytes)
    except Exception:
        cap = 64 << 20  # conservative: v7x per-TensorCore VMEM
    return int(cap * 0.8)


def _vmem_limit_bytes(tb, state_dim, action_dim, hidden_max, param_arrays):
    """Budget: double-buffered streamed batch tiles + resident params + live activations."""
    f32 = 4
    streamed = 2 * tb * (2 * state_dim + action_dim) * f32          # state/action/out, x2 buffers
    resident = 2 * sum(int(p.size) * p.dtype.itemsize for p in param_arrays)
    live_act = 4 * hidden_max * tb * f32                            # f32 accum + temporaries
    est = 2 * (streamed + resident + live_act) + (2 << 20)
    return int(min(max(est, 16 << 20), _vmem_cap_bytes()))


def _choose_batch_tile(B, block_batch):
    if block_batch is not None:
        tb = min(int(block_batch), B)
        if tb != B:
            tb = max(128, (tb // 128) * 128)   # lane-dense multiple of 128
            if tb >= B:
                tb = B
        return tb
    if B < 256:
        return B  # single full-extent tile
    # >=2 grid steps (both v7x TensorCores via "parallel"), lane width a multiple
    # of 128, capped so per-step tiles stay comfortably inside VMEM while
    # amortizing the ~0.35us per-grid-step pipeline overhead.
    return min(4096, ((pl.cdiv(B, 2) + 127) // 128) * 128)


def residual_forward(state, action, params, *, block_batch=None,
                     compute_dtype=jnp.bfloat16):
    """state: [B, state_dim], action: [B, action_dim]; returns [B, state_dim]."""
    B, state_dim = state.shape
    _, action_dim = action.shape
    (w1, b1), (w2, b2), (w3, b3), (w4, b4), (w5, b5) = params

    cdt = jnp.dtype(compute_dtype)

    # Torch-layout weights [out, in] are exactly what the feature-major kernel
    # wants (h = W @ x).  Split W1 once so the kernel never concatenates along
    # the lane axis; cast matmul operands to the compute dtype.
    w1s = w1[:, :state_dim].astype(cdt)
    w1a = w1[:, state_dim:].astype(cdt)
    w2c, w3c, w4c, w5c = (w.astype(cdt) for w in (w2, w3, w4, w5))
    # Biases stay f32 (added to the f32 MXU accumulator), shaped [out, 1] so they
    # broadcast over the batch/lane axis.
    b1c, b2c, b3c, b4c, b5c = (b.astype(jnp.float32).reshape(-1, 1)
                               for b in (b1, b2, b3, b4, b5))

    # Feature-major layout: one transpose here instead of lane-sparse tiles inside.
    state_t = state.T      # [state_dim, B]
    action_t = action.T    # [action_dim, B]

    tb = _choose_batch_tile(B, block_batch)
    grid = (pl.cdiv(B, tb),)

    param_arrays = [w1s, w1a, b1c, w2c, b2c, w3c, b3c, w4c, b4c, w5c, b5c]

    def batch_spec(feat):
        # Tiled over batch (lane axis); feature axis is the full array extent.
        return pl.BlockSpec((feat, tb), lambda i: (0, i))

    def resident_spec(arr):
        # Constant block index -> stays VMEM-resident across all grid steps.
        return pl.BlockSpec(arr.shape, lambda i: (0, 0))

    hidden_max = max(w1s.shape[0], w3c.shape[0], w5c.shape[0], state_dim)
    vmem_bytes = _vmem_limit_bytes(tb, state_dim, action_dim, hidden_max, param_arrays)

    out_fm = pl.pallas_call(
        residual_forward_kernel,
        out_shape=jax.ShapeDtypeStruct((state_dim, B), state.dtype),
        grid=grid,
        in_specs=[batch_spec(state_dim), batch_spec(action_dim)]
                 + [resident_spec(p) for p in param_arrays],
        out_specs=batch_spec(state_dim),
        compiler_params=pltpu.CompilerParams(
            dimension_semantics=("parallel",),
            vmem_limit_bytes=vmem_bytes),
    )(state_t, action_t, *param_arrays)

    return out_fm.T  # back to [B, state_dim]


def init_params(key, state_dim, action_dim, h1, h2):
    """Deterministic init, torch layout: weights [out, in], biases [out]."""
    dims = [(state_dim + action_dim, h1), (h1, h1), (h1, h2), (h2, h2), (h2, state_dim)]
    params = []
    for din, dout in dims:
        key, kw, kb = jax.random.split(key, 3)
        bound = 1.0 / (din ** 0.5)  # mimic nn.Linear default uniform bound
        w = jax.random.uniform(kw, (dout, din), jnp.float32, -bound, bound)
        b = jax.random.uniform(kb, (dout,), jnp.float32, -bound, bound)
        params.append((w, b))
    return params


def reference_forward(state, action, params):
    x = jnp.concatenate([state, action], axis=-1)
    for i, (w, b) in enumerate(params):
        x = x @ w.T + b
        if i < len(params) - 1:
            x = jnp.tanh(x)
    return x + state


if __name__ == "__main__":
    batch = 8
    state_dim = 16
    action_dim = 8
    h1 = 32
    h2 = 32

    key = jax.random.PRNGKey(0)
    k_s, k_a, k_p = jax.random.split(key, 3)

    state = jax.random.normal(k_s, (batch, state_dim), jnp.float32)
    action = jax.random.normal(k_a, (batch, action_dim), jnp.float32)
    params = init_params(k_p, state_dim, action_dim, h1, h2)

    ref = reference_forward(state, action, params)

    # Exact-path check (f32 matmul operands).
    out_f32 = jax.block_until_ready(
        residual_forward(state, action, params, compute_dtype=jnp.float32))
    assert out_f32.shape == (batch, state_dim)
    assert jnp.allclose(out_f32, ref, atol=1e-4, rtol=1e-4), "f32 kernel mismatch vs reference"

    # Fast path: bf16 weights/activations with f32 accumulation.
    out_bf16 = jax.block_until_ready(
        residual_forward(state, action, params, compute_dtype=jnp.bfloat16))
    assert out_bf16.shape == (batch, state_dim)
    assert jnp.allclose(out_bf16, ref, atol=5e-2, rtol=5e-2), "bf16 kernel mismatch vs reference"

    print("KERNEL_OK")
</pallas_src>

<mosaic_0001>
module attributes {stable_mosaic.version = 11 : i64} {
  func.func @residual_forward_kernel(%arg0: i32, %arg1: memref<16x8xf32, #tpu.memory_space<vmem>>, %arg2: memref<8x8xf32, #tpu.memory_space<vmem>>, %arg3: memref<32x16xf32, #tpu.memory_space<vmem>>, %arg4: memref<32x8xf32, #tpu.memory_space<vmem>>, %arg5: memref<32x1xf32, #tpu.memory_space<vmem>>, %arg6: memref<32x32xf32, #tpu.memory_space<vmem>>, %arg7: memref<32x1xf32, #tpu.memory_space<vmem>>, %arg8: memref<32x32xf32, #tpu.memory_space<vmem>>, %arg9: memref<32x1xf32, #tpu.memory_space<vmem>>, %arg10: memref<32x32xf32, #tpu.memory_space<vmem>>, %arg11: memref<32x1xf32, #tpu.memory_space<vmem>>, %arg12: memref<16x32xf32, #tpu.memory_space<vmem>>, %arg13: memref<16x1xf32, #tpu.memory_space<vmem>>, %arg14: memref<16x8xf32, #tpu.memory_space<vmem>>) attributes {dimension_semantics = [#tpu.dimension_semantics<parallel>], iteration_bounds = array<i64: 1>, scalar_prefetch = 0 : i64, scratch_operands = 0 : i64, tpu.core_type = #tpu.core_type<tc>, window_params = [{transform_indices = @transform_0, window_bounds = array<i64: 16, 8>}, {transform_indices = @transform_1, window_bounds = array<i64: 8, 8>}, {pipeline_mode = #tpu.pipeline_mode<synchronous>, transform_indices = @transform_2, window_bounds = array<i64: 32, 16>}, {pipeline_mode = #tpu.pipeline_mode<synchronous>, transform_indices = @transform_3, window_bounds = array<i64: 32, 8>}, {pipeline_mode = #tpu.pipeline_mode<synchronous>, transform_indices = @transform_4, window_bounds = array<i64: 32, 1>}, {pipeline_mode = #tpu.pipeline_mode<synchronous>, transform_indices = @transform_5, window_bounds = array<i64: 32, 32>}, {pipeline_mode = #tpu.pipeline_mode<synchronous>, transform_indices = @transform_6, window_bounds = array<i64: 32, 1>}, {pipeline_mode = #tpu.pipeline_mode<synchronous>, transform_indices = @transform_7, window_bounds = array<i64: 32, 32>}, {pipeline_mode = #tpu.pipeline_mode<synchronous>, transform_indices = @transform_8, window_bounds = array<i64: 32, 1>}, {pipeline_mode = #tpu.pipeline_mode<synchronous>, transform_indices = @transform_9, window_bounds = array<i64: 32, 32>}, {pipeline_mode = #tpu.pipeline_mode<synchronous>, transform_indices = @transform_10, window_bounds = array<i64: 32, 1>}, {pipeline_mode = #tpu.pipeline_mode<synchronous>, transform_indices = @transform_11, window_bounds = array<i64: 16, 32>}, {pipeline_mode = #tpu.pipeline_mode<synchronous>, transform_indices = @transform_12, window_bounds = array<i64: 16, 1>}, {transform_indices = @transform_13, window_bounds = array<i64: 16, 8>}]} {
    %c0 = arith.constant 0 : index
    %c0_0 = arith.constant 0 : index
    %0 = vector.load %arg3[%c0, %c0_0] : memref<32x16xf32, #tpu.memory_space<vmem>>, vector<32x16xf32>
    %c0_1 = arith.constant 0 : index
    %c0_2 = arith.constant 0 : index
    %1 = vector.load %arg1[%c0_1, %c0_2] : memref<16x8xf32, #tpu.memory_space<vmem>>, vector<16x8xf32>
    %cst = arith.constant dense<0.000000e+00> : vector<32x8xf32>
    %2 = tpu.matmul %0, %1, %cst {dimension_numbers = #tpu.dot_dimension_numbers<[1], [0], [0], [1], [0, 0, 1, 1], [], []>} : vector<32x16xf32>, vector<16x8xf32>, vector<32x8xf32> -> vector<32x8xf32>
    %c0_3 = arith.constant 0 : index
    %c0_4 = arith.constant 0 : index
    %3 = vector.load %arg4[%c0_3, %c0_4] : memref<32x8xf32, #tpu.memory_space<vmem>>, vector<32x8xf32>
    %c0_5 = arith.constant 0 : index
    %c0_6 = arith.constant 0 : index
    %4 = vector.load %arg2[%c0_5, %c0_6] : memref<8x8xf32, #tpu.memory_space<vmem>>, vector<8x8xf32>
    %cst_7 = arith.constant dense<0.000000e+00> : vector<32x8xf32>
    %5 = tpu.matmul %3, %4, %cst_7 {dimension_numbers = #tpu.dot_dimension_numbers<[1], [0], [0], [1], [0, 0, 1, 1], [], []>} : vector<32x8xf32>, vector<8x8xf32>, vector<32x8xf32> -> vector<32x8xf32>
    %6 = arith.addf %2, %5 : vector<32x8xf32>
    %c0_8 = arith.constant 0 : index
    %c0_9 = arith.constant 0 : index
    %7 = vector.load %arg5[%c0_8, %c0_9] : memref<32x1xf32, #tpu.memory_space<vmem>>, vector<32x1xf32>
    %8 = vector.broadcast %7 : vector<32x1xf32> to vector<32x8xf32>
    %9 = arith.addf %6, %8 : vector<32x8xf32>
    %10 = math.tanh %9 : vector<32x8xf32>
    %c0_10 = arith.constant 0 : index
    %c0_11 = arith.constant 0 : index
    %11 = vector.load %arg6[%c0_10, %c0_11] : memref<32x32xf32, #tpu.memory_space<vmem>>, vector<32x32xf32>
    %cst_12 = arith.constant dense<0.000000e+00> : vector<32x8xf32>
    %12 = tpu.matmul %11, %10, %cst_12 {dimension_numbers = #tpu.dot_dimension_numbers<[1], [0], [0], [1], [0, 0, 1, 1], [], []>} : vector<32x32xf32>, vector<32x8xf32>, vector<32x8xf32> -> vector<32x8xf32>
    %c0_13 = arith.constant 0 : index
    %c0_14 = arith.constant 0 : index
    %13 = vector.load %arg7[%c0_13, %c0_14] : memref<32x1xf32, #tpu.memory_space<vmem>>, vector<32x1xf32>
    %14 = vector.broadcast %13 : vector<32x1xf32> to vector<32x8xf32>
    %15 = arith.addf %12, %14 : vector<32x8xf32>
    %16 = math.tanh %15 : vector<32x8xf32>
    %c0_15 = arith.constant 0 : index
    %c0_16 = arith.constant 0 : index
    %17 = vector.load %arg8[%c0_15, %c0_16] : memref<32x32xf32, #tpu.memory_space<vmem>>, vector<32x32xf32>
    %cst_17 = arith.constant dense<0.000000e+00> : vector<32x8xf32>
    %18 = tpu.matmul %17, %16, %cst_17 {dimension_numbers = #tpu.dot_dimension_numbers<[1], [0], [0], [1], [0, 0, 1, 1], [], []>} : vector<32x32xf32>, vector<32x8xf32>, vector<32x8xf32> -> vector<32x8xf32>
    %c0_18 = arith.constant 0 : index
    %c0_19 = arith.constant 0 : index
    %19 = vector.load %arg9[%c0_18, %c0_19] : memref<32x1xf32, #tpu.memory_space<vmem>>, vector<32x1xf32>
    %20 = vector.broadcast %19 : vector<32x1xf32> to vector<32x8xf32>
    %21 = arith.addf %18, %20 : vector<32x8xf32>
    %22 = math.tanh %21 : vector<32x8xf32>
    %c0_20 = arith.constant 0 : index
    %c0_21 = arith.constant 0 : index
    %23 = vector.load %arg10[%c0_20, %c0_21] : memref<32x32xf32, #tpu.memory_space<vmem>>, vector<32x32xf32>
    %cst_22 = arith.constant dense<0.000000e+00> : vector<32x8xf32>
    %24 = tpu.matmul %23, %22, %cst_22 {dimension_numbers = #tpu.dot_dimension_numbers<[1], [0], [0], [1], [0, 0, 1, 1], [], []>} : vector<32x32xf32>, vector<32x8xf32>, vector<32x8xf32> -> vector<32x8xf32>
    %c0_23 = arith.constant 0 : index
    %c0_24 = arith.constant 0 : index
    %25 = vector.load %arg11[%c0_23, %c0_24] : memref<32x1xf32, #tpu.memory_space<vmem>>, vector<32x1xf32>
    %26 = vector.broadcast %25 : vector<32x1xf32> to vector<32x8xf32>
    %27 = arith.addf %24, %26 : vector<32x8xf32>
    %28 = math.tanh %27 : vector<32x8xf32>
    %c0_25 = arith.constant 0 : index
    %c0_26 = arith.constant 0 : index
    %29 = vector.load %arg12[%c0_25, %c0_26] : memref<16x32xf32, #tpu.memory_space<vmem>>, vector<16x32xf32>
    %cst_27 = arith.constant dense<0.000000e+00> : vector<16x8xf32>
    %30 = tpu.matmul %29, %28, %cst_27 {dimension_numbers = #tpu.dot_dimension_numbers<[1], [0], [0], [1], [0, 0, 1, 1], [], []>} : vector<16x32xf32>, vector<32x8xf32>, vector<16x8xf32> -> vector<16x8xf32>
    %c0_28 = arith.constant 0 : index
    %c0_29 = arith.constant 0 : index
    %31 = vector.load %arg13[%c0_28, %c0_29] : memref<16x1xf32, #tpu.memory_space<vmem>>, vector<16x1xf32>
    %32 = vector.broadcast %31 : vector<16x1xf32> to vector<16x8xf32>
    %33 = arith.addf %30, %32 : vector<16x8xf32>
    %c0_30 = arith.constant 0 : index
    %c0_31 = arith.constant 0 : index
    %34 = vector.load %arg1[%c0_30, %c0_31] : memref<16x8xf32, #tpu.memory_space<vmem>>, vector<16x8xf32>
    %35 = arith.addf %33, %34 : vector<16x8xf32>
    %c0_32 = arith.constant 0 : index
    %c0_33 = arith.constant 0 : index
    %36 = vector.load %arg14[%c0_32, %c0_33] : memref<16x8xf32, #tpu.memory_space<vmem>>, vector<16x8xf32>
    tpu.vector_store %arg14[%c0_32, %c0_33], %35 {strides = array<i32>} : memref<16x8xf32, #tpu.memory_space<vmem>>, vector<16x8xf32>,
    return
  }
  func.func @transform_0(%arg0: i32) -> (i32, i32) {
    %c0_i32 = arith.constant 0 : i32
    %c0_i32_0 = arith.constant 0 : i32
    return %c0_i32, %arg0 : i32, i32
  }
  func.func @transform_1(%arg0: i32) -> (i32, i32) {
    %c0_i32 = arith.constant 0 : i32
    %c0_i32_0 = arith.constant 0 : i32
    return %c0_i32, %arg0 : i32, i32
  }
  func.func @transform_2(%arg0: i32) -> (i32, i32) {
    %c0_i32 = arith.constant 0 : i32
    %c0_i32_0 = arith.constant 0 : i32
    %c0_i32_1 = arith.constant 0 : i32
    return %c0_i32, %c0_i32_0 : i32, i32
  }
  func.func @transform_3(%arg0: i32) -> (i32, i32) {
    %c0_i32 = arith.constant 0 : i32
    %c0_i32_0 = arith.constant 0 : i32
    %c0_i32_1 = arith.constant 0 : i32
    return %c0_i32, %c0_i32_0 : i32, i32
  }
  func.func @transform_4(%arg0: i32) -> (i32, i32) {
    %c0_i32 = arith.constant 0 : i32
    %c0_i32_0 = arith.constant 0 : i32
    %c0_i32_1 = arith.constant 0 : i32
    return %c0_i32, %c0_i32_0 : i32, i32
  }
  func.func @transform_5(%arg0: i32) -> (i32, i32) {
    %c0_i32 = arith.constant 0 : i32
    %c0_i32_0 = arith.constant 0 : i32
    %c0_i32_1 = arith.constant 0 : i32
    return %c0_i32, %c0_i32_0 : i32, i32
  }
  func.func @transform_6(%arg0: i32) -> (i32, i32) {
    %c0_i32 = arith.constant 0 : i32
    %c0_i32_0 = arith.constant 0 : i32
    %c0_i32_1 = arith.constant 0 : i32
    return %c0_i32, %c0_i32_0 : i32, i32
  }
  func.func @transform_7(%arg0: i32) -> (i32, i32) {
    %c0_i32 = arith.constant 0 : i32
    %c0_i32_0 = arith.constant 0 : i32
    %c0_i32_1 = arith.constant 0 : i32
    return %c0_i32, %c0_i32_0 : i32, i32
  }
  func.func @transform_8(%arg0: i32) -> (i32, i32) {
    %c0_i32 = arith.constant 0 : i32
    %c0_i32_0 = arith.constant 0 : i32
    %c0_i32_1 = arith.constant 0 : i32
    return %c0_i32, %c0_i32_0 : i32, i32
  }
  func.func @transform_9(%arg0: i32) -> (i32, i32) {
    %c0_i32 = arith.constant 0 : i32
    %c0_i32_0 = arith.constant 0 : i32
    %c0_i32_1 = arith.constant 0 : i32
    return %c0_i32, %c0_i32_0 : i32, i32
  }
  func.func @transform_10(%arg0: i32) -> (i32, i32) {
    %c0_i32 = arith.constant 0 : i32
    %c0_i32_0 = arith.constant 0 : i32
    %c0_i32_1 = arith.constant 0 : i32
    return %c0_i32, %c0_i32_0 : i32, i32
  }
  func.func @transform_11(%arg0: i32) -> (i32, i32) {
    %c0_i32 = arith.constant 0 : i32
    %c0_i32_0 = arith.constant 0 : i32
    %c0_i32_1 = arith.constant 0 : i32
    return %c0_i32, %c0_i32_0 : i32, i32
  }
  func.func @transform_12(%arg0: i32) -> (i32, i32) {
    %c0_i32 = arith.constant 0 : i32
    %c0_i32_0 = arith.constant 0 : i32
    %c0_i32_1 = arith.constant 0 : i32
    return %c0_i32, %c0_i32_0 : i32, i32
  }
  func.func @transform_13(%arg0: i32) -> (i32, i32) {
    %c0_i32 = arith.constant 0 : i32
    %c0_i32_0 = arith.constant 0 : i32
    return %c0_i32, %arg0 : i32, i32
  }
}

</mosaic_0001>

<llo_original>
// kernel: tpu_custom_call.1
$region0: #{tpu_custom_call.1}
  #allocation0 [shape = 'u32[]', space=smem, size = 0x4, offset = 0x4, fixed_abs, tag = 'smem constant byte address 0x4 - core index']
  #allocation1 [shape = 'u32[144,128]{1,0:T(1,128)}', space=vmem, size = 0x12000, scoped, tag = 'internal scratch']
  %s0 = inlined_call_operand.vmem [shape: f32[16,8], index: 0, kind: input, shape index: {}]
  %s1 = inlined_call_operand.vmem [shape: f32[8,8], index: 1, kind: input, shape index: {}]
  %s2 = inlined_call_operand.vmem [shape: f32[32,16], index: 2, kind: input, shape index: {}]
  %s3 = inlined_call_operand.vmem [shape: f32[32,8], index: 3, kind: input, shape index: {}]
  %s4 = inlined_call_operand.vmem [shape: f32[32,1], index: 4, kind: input, shape index: {}]
  %s5 = inlined_call_operand.vmem [shape: f32[32,32], index: 5, kind: input, shape index: {}]
  %s6 = inlined_call_operand.vmem [shape: f32[32,1], index: 6, kind: input, shape index: {}]
  %s7 = inlined_call_operand.vmem [shape: f32[32,32], index: 7, kind: input, shape index: {}]
  %s8 = inlined_call_operand.vmem [shape: f32[32,1], index: 8, kind: input, shape index: {}]
  %s9 = inlined_call_operand.vmem [shape: f32[32,32], index: 9, kind: input, shape index: {}]
  %s10 = inlined_call_operand.vmem [shape: f32[32,1], index: 10, kind: input, shape index: {}]
  %s11 = inlined_call_operand.vmem [shape: f32[16,32], index: 11, kind: input, shape index: {}]
  %s12 = inlined_call_operand.vmem [shape: f32[16,1], index: 12, kind: input, shape index: {}]
  %s13 = inlined_call_operand.vmem [shape: f32[16,8], index: 13, kind: output, shape index: {}]
  %s14 = sld [smem:[#allocation0]]
  $region62: #{tpu_custom_call.1} parent=0
    _
  %s16 = ssub.s32 1, %s14
  %s17 = scalar_select 0, %s16, %s14
  // Predicated region
  $region2: #{tpu_custom_call.1} parent=0 // pred_check
    _
  $region3: #{tpu_custom_call.1} parent=0 // pred_check_branch
    %19 = sbr.rel (0) target = $region5
  $region4: #{tpu_custom_call.1} parent=0 // pred_region
    _
  $region5: #{tpu_custom_call.1} parent=0 // pred_fallthru
    _
  // Predicated region
  $region6: #{tpu_custom_call.1} parent=0 // pred_check
    _
  $region7: #{tpu_custom_call.1} parent=0 // pred_check_branch
    %21 = sbr.rel (0) target = $region9
  $region8: #{tpu_custom_call.1} parent=0 // pred_region
    _
  $region9: #{tpu_custom_call.1} parent=0 // pred_fallthru
    _
  // Predicated region
  $region10: #{tpu_custom_call.1} parent=0 // pred_check
    _
  $region11: #{tpu_custom_call.1} parent=0 // pred_check_branch
    %23 = sbr.rel (0) target = $region13
  $region12: #{tpu_custom_call.1} parent=0 // pred_region
    _
  $region13: #{tpu_custom_call.1} parent=0 // pred_fallthru
    _
  // Predicated region
  $region14: #{tpu_custom_call.1} parent=0 // pred_check
    _
  $region15: #{tpu_custom_call.1} parent=0 // pred_check_branch
    %25 = sbr.rel (0) target = $region17
  $region16: #{tpu_custom_call.1} parent=0 // pred_region
    _
  $region17: #{tpu_custom_call.1} parent=0 // pred_fallthru
    _
  // Predicated region
  $region18: #{tpu_custom_call.1} parent=0 // pred_check
    _
  $region19: #{tpu_custom_call.1} parent=0 // pred_check_branch
    %27 = sbr.rel (0) target = $region21
  $region20: #{tpu_custom_call.1} parent=0 // pred_region
    _
  $region21: #{tpu_custom_call.1} parent=0 // pred_fallthru
    _
  // Predicated region
  $region22: #{tpu_custom_call.1} parent=0 // pred_check
    _
  $region23: #{tpu_custom_call.1} parent=0 // pred_check_branch
    %29 = sbr.rel (0) target = $region25
  $region24: #{tpu_custom_call.1} parent=0 // pred_region
    _
  $region25: #{tpu_custom_call.1} parent=0 // pred_fallthru
    _
  // Predicated region
  $region26: #{tpu_custom_call.1} parent=0 // pred_check
    _
  $region27: #{tpu_custom_call.1} parent=0 // pred_check_branch
    %31 = sbr.rel (0) target = $region29
  $region28: #{tpu_custom_call.1} parent=0 // pred_region
    _
  $region29: #{tpu_custom_call.1} parent=0 // pred_fallthru
    _
  // Predicated region
  $region30: #{tpu_custom_call.1} parent=0 // pred_check
    _
  $region31: #{tpu_custom_call.1} parent=0 // pred_check_branch
    %33 = sbr.rel (0) target = $region33
  $region32: #{tpu_custom_call.1} parent=0 // pred_region
    _
  $region33: #{tpu_custom_call.1} parent=0 // pred_fallthru
    _
  // Predicated region
  $region34: #{tpu_custom_call.1} parent=0 // pred_check
    _
  $region35: #{tpu_custom_call.1} parent=0 // pred_check_branch
    %35 = sbr.rel (0) target = $region37
  $region36: #{tpu_custom_call.1} parent=0 // pred_region
    _
  $region37: #{tpu_custom_call.1} parent=0 // pred_fallthru
    _
  // Predicated region
  $region38: #{tpu_custom_call.1} parent=0 // pred_check
    _
  $region39: #{tpu_custom_call.1} parent=0 // pred_check_branch
    %37 = sbr.rel (0) target = $region41
  $region40: #{tpu_custom_call.1} parent=0 // pred_region
    _
  $region41: #{tpu_custom_call.1} parent=0 // pred_fallthru
    _
  // Predicated region
  $region42: #{tpu_custom_call.1} parent=0 // pred_check
    _
  $region43: #{tpu_custom_call.1} parent=0 // pred_check_branch
    %39 = sbr.rel (0) target = $region45
  $region44: #{tpu_custom_call.1} parent=0 // pred_region
    _
  $region45: #{tpu_custom_call.1} parent=0 // pred_fallthru
    _
  // Predicated region
  $region46: #{tpu_custom_call.1} parent=0 // pred_check
    _
  $region47: #{tpu_custom_call.1} parent=0 // pred_check_branch
    %41 = sbr.rel (0) target = $region49
  $region48: #{tpu_custom_call.1} parent=0 // pred_region
    _
  $region49: #{tpu_custom_call.1} parent=0 // pred_fallthru
    _
  // Predicated region
  $region50: #{tpu_custom_call.1} parent=0 // pred_check
    _
  $region51: #{tpu_custom_call.1} parent=0 // pred_check_branch
    %43 = sbr.rel (0) target = $region53
  $region52: #{tpu_custom_call.1} parent=0 // pred_region
    _
  $region53: #{tpu_custom_call.1} parent=0 // pred_fallthru
    _
  %v44 = vld [vmem:[%s2] sm:$0xff]
  %v45 = vld [vmem:[%s2 + $0x8] sm:$0xff]
  %v46 = vld [vmem:[%s2 + $0x10] sm:$0xff]
  %v47 = vld [vmem:[%s2 + $0x18] sm:$0xff]
  %v48 = vld [vmem:[%s0] sm:$0xff]
  %v49 = vld [vmem:[%s0 + $0x8] sm:$0xff]
  %v50 = vld [vmem:[%s3] sm:$0xff]
  %v51 = vld [vmem:[%s3 + $0x8] sm:$0xff]
  %v52 = vld [vmem:[%s3 + $0x10] sm:$0xff]
  %v53 = vld [vmem:[%s3 + $0x18] sm:$0xff]
  %v54 = vld [vmem:[%s1] sm:$0xff]
  %vm55 = vcmask 64512
  %v57 = vsel %vm55, %v50, 0
  %v60 = vsel %vm55, %v51, 0
  %v63 = vsel %vm55, %v52, 0
  %v66 = vsel %vm55, %v53, 0
  %68 = vmatprep.subr.mxu0 0.0
  %69 = vmatpush1.msra.mxu0 %v54
  %70 = vmatprep.subr.mxu0 0.0
  %71 = vmatpush1.msra.mxu0 0.0
  %72 = vmatprep.subr.mxu0 0.0
  %73 = vmatpush1.msra.mxu0 0.0
  %74 = vmatprep.subr.mxu0 0.0
  %75 = vmatpush1.msra.mxu0 0.0
  %76 = vmatprep.subr.mxu0 0.0
  %77 = vmatpush1.msra.mxu0 0.0
  %78 = vmatprep.subr.mxu0 0.0
  %79 = vmatpush1.msra.mxu0 0.0
  %80 = vmatprep.subr.mxu0 0.0
  %81 = vmatpush1.msra.mxu0 0.0
  %82 = vmatprep.subr.mxu0 0.0
  %83 = vmatpush1.msra.mxu0 0.0
  %84 = vmatprep.subr.mxu0 0.0
  %85 = vmatpush1.msra.mxu0 0.0
  %86 = vmatprep.subr.mxu0 0.0
  %87 = vmatpush1.msra.mxu0 0.0
  %88 = vmatprep.subr.mxu0 0.0
  %89 = vmatpush1.msra.mxu0 0.0
  %90 = vmatprep.subr.mxu0 0.0
  %91 = vmatpush1.msra.mxu0 0.0
  %92 = vmatprep.subr.mxu0 0.0
  %93 = vmatpush1.msra.mxu0 0.0
  %94 = vmatprep.subr.mxu0 0.0
  %95 = vmatpush1.msra.mxu0 0.0
  %96 = vmatprep.subr.mxu0 0.0
  %97 = vmatpush1.msra.mxu0 0.0
  %98 = vmatprep.subr.mxu0 0.0
  %99 = vmatpush1.msra.mxu0 0.0
  %100 = vmatprep.subr.mxu0 0.0
  %101 = vmatpush1.msra.mxu0 0.0
  %102 = vmatprep.subr.mxu0 0.0
  %103 = vmatpush1.msra.mxu0 0.0
  %104 = vmatprep.subr.mxu0 0.0
  %105 = vmatpush1.msra.mxu0 0.0
  %106 = vmatprep.subr.mxu0 0.0
  %107 = vmatpush1.msra.mxu0 0.0
  %108 = vmatprep.subr.mxu0 0.0
  %109 = vmatpush1.msra.mxu0 0.0
  %110 = vmatprep.subr.mxu0 0.0
  %111 = vmatpush1.msra.mxu0 0.0
  %112 = vmatprep.subr.mxu0 0.0
  %113 = vmatpush1.msra.mxu0 0.0
  %114 = vmatprep.subr.mxu0 0.0
  %115 = vmatpush1.msra.mxu0 0.0
  %116 = vmatprep.subr.mxu0 0.0
  %117 = vmatpush1.msra.mxu0 0.0
  %118 = vmatprep.subr.mxu0 0.0
  %119 = vmatpush1.msra.mxu0 0.0
  %120 = vmatprep.subr.mxu0 0.0
  %121 = vmatpush1.msra.mxu0 0.0
  %122 = vmatprep.subr.mxu0 0.0
  %123 = vmatpush1.msra.mxu0 0.0
  %124 = vmatprep.subr.mxu0 0.0
  %125 = vmatpush1.msra.mxu0 0.0
  %126 = vmatprep.subr.mxu0 0.0
  %127 = vmatpush1.msra.mxu0 0.0
  %128 = vmatprep.subr.mxu0 0.0
  %129 = vmatpush1.msra.mxu0 0.0
  %130 = vmatprep.subr.mxu0 0.0
  %131 = vmatpush1.msra.mxu0 0.0
  %132 = vmatprep.mubr.f32.mxu0 0.0
  %133 = vmatmul.mubr.f32.gmra.mrb[0].mxu0 %v57
  %v134 = vpop.f32.mrb[0].mxu0
  %v135 = vadd.f32 0.0, %v134
  %v136 = vpop.f32.mrb[0].mxu0
  %137 = vmatprep.mubr.f32.mxu0 0.0
  %138 = vmatmul.mubr.f32.gmra.mrb[0].mxu0 %v60
  %v139 = vpop.f32.mrb[0].mxu0
  %v140 = vadd.f32 0.0, %v139
  %v141 = vpop.f32.mrb[0].mxu0
  %142 = vmatprep.mubr.f32.mxu0 0.0
  %143 = vmatmul.mubr.f32.gmra.mrb[0].mxu0 %v63
  %v144 = vpop.f32.mrb[0].mxu0
  %v145 = vadd.f32 0.0, %v144
  %v146 = vpop.f32.mrb[0].mxu0
  %147 = vmatprep.mubr.f32.mxu0 0.0
  %148 = vmatmul.mubr.f32.gmra.mrb[0].mxu0 %v66
  %v149 = vpop.f32.mrb[0].mxu0
  %v150 = vadd.f32 0.0, %v149
  %v151 = vpop.f32.mrb[0].mxu0
  %152 = vdwg.mxu0
  %vm153 = vcmask 130048
  %v155 = vsel %vm153, %v44, 0
  %v158 = vsel %vm153, %v45, 0
  %v161 = vsel %vm153, %v46, 0
  %v164 = vsel %vm153, %v47, 0
  %166 = vmatprep.subr.mxu0 0.0
  %167 = vmatpush1.msra.mxu0 %v48
  %168 = vmatprep.subr.mxu0 0.0
  %169 = vmatpush1.msra.mxu0 %v49
  %170 = vmatprep.subr.mxu0 0.0
  %171 = vmatpush1.msra.mxu0 0.0
  %172 = vmatprep.subr.mxu0 0.0
  %173 = vmatpush1.msra.mxu0 0.0
  %174 = vmatprep.subr.mxu0 0.0
  %175 = vmatpush1.msra.mxu0 0.0
  %176 = vmatprep.subr.mxu0 0.0
  %177 = vmatpush1.msra.mxu0 0.0
  %178 = vmatprep.subr.mxu0 0.0
  %179 = vmatpush1.msra.mxu0 0.0
  %180 = vmatprep.subr.mxu0 0.0
  %181 = vmatpush1.msra.mxu0 0.0
  %182 = vmatprep.subr.mxu0 0.0
  %183 = vmatpush1.msra.mxu0 0.0
  %184 = vmatprep.subr.mxu0 0.0
  %185 = vmatpush1.msra.mxu0 0.0
  %186 = vmatprep.subr.mxu0 0.0
  %187 = vmatpush1.msra.mxu0 0.0
  %188 = vmatprep.subr.mxu0 0.0
  %189 = vmatpush1.msra.mxu0 0.0
  %190 = vmatprep.subr.mxu0 0.0
  %191 = vmatpush1.msra.mxu0 0.0
  %192 = vmatprep.subr.mxu0 0.0
  %193 = vmatpush1.msra.mxu0 0.0
  %194 = vmatprep.subr.mxu0 0.0
  %195 = vmatpush1.msra.mxu0 0.0
  %196 = vmatprep.subr.mxu0 0.0
  %197 = vmatpush1.msra.mxu0 0.0
  %198 = vmatprep.subr.mxu0 0.0
  %199 = vmatpush1.msra.mxu0 0.0
  %200 = vmatprep.subr.mxu0 0.0
  %201 = vmatpush1.msra.mxu0 0.0
  %202 = vmatprep.subr.mxu0 0.0
  %203 = vmatpush1.msra.mxu0 0.0
  %204 = vmatprep.subr.mxu0 0.0
  %205 = vmatpush1.msra.mxu0 0.0
  %206 = vmatprep.subr.mxu0 0.0
  %207 = vmatpush1.msra.mxu0 0.0
  %208 = vmatprep.subr.mxu0 0.0
  %209 = vmatpush1.msra.mxu0 0.0
  %210 = vmatprep.subr.mxu0 0.0
  %211 = vmatpush1.msra.mxu0 0.0
  %212 = vmatprep.subr.mxu0 0.0
  %213 = vmatpush1.msra.mxu0 0.0
  %214 = vmatprep.subr.mxu0 0.0
  %215 = vmatpush1.msra.mxu0 0.0
  %216 = vmatprep.subr.mxu0 0.0
  %217 = vmatpush1.msra.mxu0 0.0
  %218 = vmatprep.subr.mxu0 0.0
  %219 = vmatpush1.msra.mxu0 0.0
  %220 = vmatprep.subr.mxu0 0.0
  %221 = vmatpush1.msra.mxu0 0.0
  %222 = vmatprep.subr.mxu0 0.0
  %223 = vmatpush1.msra.mxu0 0.0
  %224 = vmatprep.subr.mxu0 0.0
  %225 = vmatpush1.msra.mxu0 0.0
  %226 = vmatprep.subr.mxu0 0.0
  %227 = vmatpush1.msra.mxu0 0.0
  %228 = vmatprep.subr.mxu0 0.0
  %229 = vmatpush1.msra.mxu0 0.0
  %230 = vmatprep.mubr.f32.mxu0 0.0
  %231 = vmatmul.mubr.f32.gmra.mrb[0].mxu0 %v155
  %v232 = vpop.f32.mrb[0].mxu0
  %v233 = vadd.f32 %v135, %v232
  %v234 = vpop.f32.mrb[0].mxu0
  %235 = vmatprep.mubr.f32.mxu0 0.0
  %236 = vmatmul.mubr.f32.gmra.mrb[0].mxu0 %v158
  %v237 = vpop.f32.mrb[0].mxu0
  %v238 = vadd.f32 %v140, %v237
  %v239 = vpop.f32.mrb[0].mxu0
  %240 = vmatprep.mubr.f32.mxu0 0.0
  %241 = vmatmul.mubr.f32.gmra.mrb[0].mxu0 %v161
  %v242 = vpop.f32.mrb[0].mxu0
  %v243 = vadd.f32 %v145, %v242
  %v244 = vpop.f32.mrb[0].mxu0
  %245 = vmatprep.mubr.f32.mxu0 0.0
  %246 = vmatmul.mubr.f32.gmra.mrb[0].mxu0 %v164
  %v247 = vpop.f32.mrb[0].mxu0
  %v248 = vadd.f32 %v150, %v247
  %v249 = vpop.f32.mrb[0].mxu0
  %250 = vdwg.mxu0
  %v251 = vld [vmem:[%s4] sm:$0xff]
  %v252 = vld [vmem:[%s4 + $0x8] sm:$0xff]
  %v253 = vld [vmem:[%s4 + $0x10] sm:$0xff]
  %v254 = vld [vmem:[%s4 + $0x18] sm:$0xff]
  %256 = vset.pattern.permute.xlu0 0
  %257 = vperm.xlu0 %256, %v251
  %v258 = vpop.permute.xlu0 %257
  %261 = vset.pattern.permute.xlu0 0
  %262 = vperm.xlu0 %261, %v252
  %v263 = vpop.permute.xlu0 %262
  %266 = vset.pattern.permute.xlu0 0
  %267 = vperm.xlu0 %266, %v253
  %v268 = vpop.permute.xlu0 %267
  %271 = vset.pattern.permute.xlu0 0
  %272 = vperm.xlu0 %271, %v254
  %v273 = vpop.permute.xlu0 %272
  %v275 = vadd.f32 %v233, %v258
  %v276 = vadd.f32 %v238, %v263
  %v277 = vadd.f32 %v243, %v268
  %v278 = vadd.f32 %v248, %v273
  %v279 = vtanh.pop %v275
  %v280 = vtanh.pop %v276
  %v281 = vtanh.pop %v277
  %v282 = vtanh.pop %v278
  %v283 = vld [vmem:[%s5] sm:$0xff]
  %v284 = vld [vmem:[%s5 + $0x8] sm:$0xff]
  %v285 = vld [vmem:[%s5 + $0x10] sm:$0xff]
  %v286 = vld [vmem:[%s5 + $0x18] sm:$0xff]
  %v287 = vld [vmem:[%s6] sm:$0xff]
  %v288 = vld [vmem:[%s6 + $0x8] sm:$0xff]
  %v289 = vld [vmem:[%s6 + $0x10] sm:$0xff]
  %v290 = vld [vmem:[%s6 + $0x18] sm:$0xff]
  %292 = vset.pattern.permute.xlu0 0
  %293 = vperm.xlu0 %292, %v287
  %v294 = vpop.permute.xlu0 %293
  %297 = vset.pattern.permute.xlu0 0
  %298 = vperm.xlu0 %297, %v288
  %v299 = vpop.permute.xlu0 %298
  %302 = vset.pattern.permute.xlu0 0
  %303 = vperm.xlu0 %302, %v289
  %v304 = vpop.permute.xlu0 %303
  %307 = vset.pattern.permute.xlu0 0
  %308 = vperm.xlu0 %307, %v290
  %v309 = vpop.permute.xlu0 %308
  %vm311 = vcmask 261120
  %v313 = vsel %vm311, %v283, 0
  %v316 = vsel %vm311, %v284, 0
  %v319 = vsel %vm311, %v285, 0
  %v322 = vsel %vm311, %v286, 0
  %324 = vmatprep.subr.mxu0 0.0
  %325 = vmatpush1.msra.mxu0 %v279
  %326 = vmatprep.subr.mxu0 0.0
  %327 = vmatpush1.msra.mxu0 %v280
  %328 = vmatprep.subr.mxu0 0.0
  %329 = vmatpush1.msra.mxu0 %v281
  %330 = vmatprep.subr.mxu0 0.0
  %331 = vmatpush1.msra.mxu0 %v282
  %332 = vmatprep.subr.mxu0 0.0
  %333 = vmatpush1.msra.mxu0 0.0
  %334 = vmatprep.subr.mxu0 0.0
  %335 = vmatpush1.msra.mxu0 0.0
  %336 = vmatprep.subr.mxu0 0.0
  %337 = vmatpush1.msra.mxu0 0.0
  %338 = vmatprep.subr.mxu0 0.0
  %339 = vmatpush1.msra.mxu0 0.0
  %340 = vmatprep.subr.mxu0 0.0
  %341 = vmatpush1.msra.mxu0 0.0
  %342 = vmatprep.subr.mxu0 0.0
  %343 = vmatpush1.msra.mxu0 0.0
  %344 = vmatprep.subr.mxu0 0.0
  %345 = vmatpush1.msra.mxu0 0.0
  %346 = vmatprep.subr.mxu0 0.0
  %347 = vmatpush1.msra.mxu0 0.0
  %348 = vmatprep.subr.mxu0 0.0
  %349 = vmatpush1.msra.mxu0 0.0
  %350 = vmatprep.subr.mxu0 0.0
  %351 = vmatpush1.msra.mxu0 0.0
  %352 = vmatprep.subr.mxu0 0.0
  %353 = vmatpush1.msra.mxu0 0.0
  %354 = vmatprep.subr.mxu0 0.0
  %355 = vmatpush1.msra.mxu0 0.0
  %356 = vmatprep.subr.mxu0 0.0
  %357 = vmatpush1.msra.mxu0 0.0
  %358 = vmatprep.subr.mxu0 0.0
  %359 = vmatpush1.msra.mxu0 0.0
  %360 = vmatprep.subr.mxu0 0.0
  %361 = vmatpush1.msra.mxu0 0.0
  %362 = vmatprep.subr.mxu0 0.0
  %363 = vmatpush1.msra.mxu0 0.0
  %364 = vmatprep.subr.mxu0 0.0
  %365 = vmatpush1.msra.mxu0 0.0
  %366 = vmatprep.subr.mxu0 0.0
  %367 = vmatpush1.msra.mxu0 0.0
  %368 = vmatprep.subr.mxu0 0.0
  %369 = vmatpush1.msra.mxu0 0.0
  %370 = vmatprep.subr.mxu0 0.0
  %371 = vmatpush1.msra.mxu0 0.0
  %372 = vmatprep.subr.mxu0 0.0
  %373 = vmatpush1.msra.mxu0 0.0
  %374 = vmatprep.subr.mxu0 0.0
  %375 = vmatpush1.msra.mxu0 0.0
  %376 = vmatprep.subr.mxu0 0.0
  %377 = vmatpush1.msra.mxu0 0.0
  %378 = vmatprep.subr.mxu0 0.0
  %379 = vmatpush1.msra.mxu0 0.0
  %380 = vmatprep.subr.mxu0 0.0
  %381 = vmatpush1.msra.mxu0 0.0
  %382 = vmatprep.subr.mxu0 0.0
  %383 = vmatpush1.msra.mxu0 0.0
  %384 = vmatprep.subr.mxu0 0.0
  %385 = vmatpush1.msra.mxu0 0.0
  %386 = vmatprep.subr.mxu0 0.0
  %387 = vmatpush1.msra.mxu0 0.0
  %388 = vmatprep.mubr.f32.mxu0 0.0
  %389 = vmatmul.mubr.f32.gmra.mrb[0].mxu0 %v313
  %v390 = vpop.f32.mrb[0].mxu0
  %v391 = vadd.f32 %v294, %v390
  %v392 = vpop.f32.mrb[0].mxu0
  %393 = vmatprep.mubr.f32.mxu0 0.0
  %394 = vmatmul.mubr.f32.gmra.mrb[0].mxu0 %v316
  %v395 = vpop.f32.mrb[0].mxu0
  %v396 = vadd.f32 %v299, %v395
  %v397 = vpop.f32.mrb[0].mxu0
  %398 = vmatprep.mubr.f32.mxu0 0.0
  %399 = vmatmul.mubr.f32.gmra.mrb[0].mxu0 %v319
  %v400 = vpop.f32.mrb[0].mxu0
  %v401 = vadd.f32 %v304, %v400
  %v402 = vpop.f32.mrb[0].mxu0
  %403 = vmatprep.mubr.f32.mxu0 0.0
  %404 = vmatmul.mubr.f32.gmra.mrb[0].mxu0 %v322
  %v405 = vpop.f32.mrb[0].mxu0
  %v406 = vadd.f32 %v309, %v405
  %v407 = vpop.f32.mrb[0].mxu0
  %408 = vdwg.mxu0
  %v409 = vtanh.pop %v391
  %v410 = vtanh.pop %v396
  %v411 = vtanh.pop %v401
  %v412 = vtanh.pop %v406
  %v413 = vld [vmem:[%s7] sm:$0xff]
  %v414 = vld [vmem:[%s7 + $0x8] sm:$0xff]
  %v415 = vld [vmem:[%s7 + $0x10] sm:$0xff]
  %v416 = vld [vmem:[%s7 + $0x18] sm:$0xff]
  %v417 = vld [vmem:[%s8] sm:$0xff]
  %v418 = vld [vmem:[%s8 + $0x8] sm:$0xff]
  %v419 = vld [vmem:[%s8 + $0x10] sm:$0xff]
  %v420 = vld [vmem:[%s8 + $0x18] sm:$0xff]
  %422 = vset.pattern.permute.xlu0 0
  %423 = vperm.xlu0 %422, %v417
  %v424 = vpop.permute.xlu0 %423
  %427 = vset.pattern.permute.xlu0 0
  %428 = vperm.xlu0 %427, %v418
  %v429 = vpop.permute.xlu0 %428
  %432 = vset.pattern.permute.xlu0 0
  %433 = vperm.xlu0 %432, %v419
  %v434 = vpop.permute.xlu0 %433
  %437 = vset.pattern.permute.xlu0 0
  %438 = vperm.xlu0 %437, %v420
  %v439 = vpop.permute.xlu0 %438
  %v442 = vsel %vm311, %v413, 0
  %v445 = vsel %vm311, %v414, 0
  %v448 = vsel %vm311, %v415, 0
  %v451 = vsel %vm311, %v416, 0
  %453 = vmatprep.subr.mxu0 0.0
  %454 = vmatpush1.msra.mxu0 %v409
  %455 = vmatprep.subr.mxu0 0.0
  %456 = vmatpush1.msra.mxu0 %v410
  %457 = vmatprep.subr.mxu0 0.0
  %458 = vmatpush1.msra.mxu0 %v411
  %459 = vmatprep.subr.mxu0 0.0
  %460 = vmatpush1.msra.mxu0 %v412
  %461 = vmatprep.subr.mxu0 0.0
  %462 = vmatpush1.msra.mxu0 0.0
  %463 = vmatprep.subr.mxu0 0.0
  %464 = vmatpush1.msra.mxu0 0.0
  %465 = vmatprep.subr.mxu0 0.0
  %466 = vmatpush1.msra.mxu0 0.0
  %467 = vmatprep.subr.mxu0 0.0
  %468 = vmatpush1.msra.mxu0 0.0
  %469 = vmatprep.subr.mxu0 0.0
  %470 = vmatpush1.msra.mxu0 0.0
  %471 = vmatprep.subr.mxu0 0.0
  %472 = vmatpush1.msra.mxu0 0.0
  %473 = vmatprep.subr.mxu0 0.0
  %474 = vmatpush1.msra.mxu0 0.0
  %475 = vmatprep.subr.mxu0 0.0
  %476 = vmatpush1.msra.mxu0 0.0
  %477 = vmatprep.subr.mxu0 0.0
  %478 = vmatpush1.msra.mxu0 0.0
  %479 = vmatprep.subr.mxu0 0.0
  %480 = vmatpush1.msra.mxu0 0.0
  %481 = vmatprep.subr.mxu0 0.0
  %482 = vmatpush1.msra.mxu0 0.0
  %483 = vmatprep.subr.mxu0 0.0
  %484 = vmatpush1.msra.mxu0 0.0
  %485 = vmatprep.subr.mxu0 0.0
  %486 = vmatpush1.msra.mxu0 0.0
  %487 = vmatprep.subr.mxu0 0.0
  %488 = vmatpush1.msra.mxu0 0.0
  %489 = vmatprep.subr.mxu0 0.0
  %490 = vmatpush1.msra.mxu0 0.0
  %491 = vmatprep.subr.mxu0 0.0
  %492 = vmatpush1.msra.mxu0 0.0
  %493 = vmatprep.subr.mxu0 0.0
  %494 = vmatpush1.msra.mxu0 0.0
  %495 = vmatprep.subr.mxu0 0.0
  %496 = vmatpush1.msra.mxu0 0.0
  %497 = vmatprep.subr.mxu0 0.0
  %498 = vmatpush1.msra.mxu0 0.0
  %499 = vmatprep.subr.mxu0 0.0
  %500 = vmatpush1.msra.mxu0 0.0
  %501 = vmatprep.subr.mxu0 0.0
  %502 = vmatpush1.msra.mxu0 0.0
  %503 = vmatprep.subr.mxu0 0.0
  %504 = vmatpush1.msra.mxu0 0.0
  %505 = vmatprep.subr.mxu0 0.0
  %506 = vmatpush1.msra.mxu0 0.0
  %507 = vmatprep.subr.mxu0 0.0
  %508 = vmatpush1.msra.mxu0 0.0
  %509 = vmatprep.subr.mxu0 0.0
  %510 = vmatpush1.msra.mxu0 0.0
  %511 = vmatprep.subr.mxu0 0.0
  %512 = vmatpush1.msra.mxu0 0.0
  %513 = vmatprep.subr.mxu0 0.0
  %514 = vmatpush1.msra.mxu0 0.0
  %515 = vmatprep.subr.mxu0 0.0
  %516 = vmatpush1.msra.mxu0 0.0
  %517 = vmatprep.mubr.f32.mxu0 0.0
  %518 = vmatmul.mubr.f32.gmra.mrb[0].mxu0 %v442
  %v519 = vpop.f32.mrb[0].mxu0
  %v520 = vadd.f32 %v424, %v519
  %v521 = vpop.f32.mrb[0].mxu0
  %522 = vmatprep.mubr.f32.mxu0 0.0
  %523 = vmatmul.mubr.f32.gmra.mrb[0].mxu0 %v445
  %v524 = vpop.f32.mrb[0].mxu0
  %v525 = vadd.f32 %v429, %v524
  %v526 = vpop.f32.mrb[0].mxu0
  %527 = vmatprep.mubr.f32.mxu0 0.0
  %528 = vmatmul.mubr.f32.gmra.mrb[0].mxu0 %v448
  %v529 = vpop.f32.mrb[0].mxu0
  %v530 = vadd.f32 %v434, %v529
  %v531 = vpop.f32.mrb[0].mxu0
  %532 = vmatprep.mubr.f32.mxu0 0.0
  %533 = vmatmul.mubr.f32.gmra.mrb[0].mxu0 %v451
  %v534 = vpop.f32.mrb[0].mxu0
  %v535 = vadd.f32 %v439, %v534
  %v536 = vpop.f32.mrb[0].mxu0
  %537 = vdwg.mxu0
  %v538 = vtanh.pop %v520
  %v539 = vtanh.pop %v525
  %v540 = vtanh.pop %v530
  %v541 = vtanh.pop %v535
  %v542 = vld [vmem:[%s9] sm:$0xff]
  %v543 = vld [vmem:[%s9 + $0x8] sm:$0xff]
  %v544 = vld [vmem:[%s9 + $0x10] sm:$0xff]
  %v545 = vld [vmem:[%s9 + $0x18] sm:$0xff]
  %v546 = vld [vmem:[%s10] sm:$0xff]
  %v547 = vld [vmem:[%s10 + $0x8] sm:$0xff]
  %v548 = vld [vmem:[%s10 + $0x10] sm:$0xff]
  %v549 = vld [vmem:[%s10 + $0x18] sm:$0xff]
  %551 = vset.pattern.permute.xlu0 0
  %552 = vperm.xlu0 %551, %v546
  %v553 = vpop.permute.xlu0 %552
  %556 = vset.pattern.permute.xlu0 0
  %557 = vperm.xlu0 %556, %v547
  %v558 = vpop.permute.xlu0 %557
  %561 = vset.pattern.permute.xlu0 0
  %562 = vperm.xlu0 %561, %v548
  %v563 = vpop.permute.xlu0 %562
  %566 = vset.pattern.permute.xlu0 0
  %567 = vperm.xlu0 %566, %v549
  %v568 = vpop.permute.xlu0 %567
  %v571 = vsel %vm311, %v542, 0
  %v574 = vsel %vm311, %v543, 0
  %v577 = vsel %vm311, %v544, 0
  %v580 = vsel %vm311, %v545, 0
  %582 = vmatprep.subr.mxu0 0.0
  %583 = vmatpush1.msra.mxu0 %v538
  %584 = vmatprep.subr.mxu0 0.0
  %585 = vmatpush1.msra.mxu0 %v539
  %586 = vmatprep.subr.mxu0 0.0
  %587 = vmatpush1.msra.mxu0 %v540
  %588 = vmatprep.subr.mxu0 0.0
  %589 = vmatpush1.msra.mxu0 %v541
  %590 = vmatprep.subr.mxu0 0.0
  %591 = vmatpush1.msra.mxu0 0.0
  %592 = vmatprep.subr.mxu0 0.0
  %593 = vmatpush1.msra.mxu0 0.0
  %594 = vmatprep.subr.mxu0 0.0
  %595 = vmatpush1.msra.mxu0 0.0
  %596 = vmatprep.subr.mxu0 0.0
  %597 = vmatpush1.msra.mxu0 0.0
  %598 = vmatprep.subr.mxu0 0.0
  %599 = vmatpush1.msra.mxu0 0.0
  %600 = vmatprep.subr.mxu0 0.0
  %601 = vmatpush1.msra.mxu0 0.0
  %602 = vmatprep.subr.mxu0 0.0
  %603 = vmatpush1.msra.mxu0 0.0
  %604 = vmatprep.subr.mxu0 0.0
  %605 = vmatpush1.msra.mxu0 0.0
  %606 = vmatprep.subr.mxu0 0.0
  %607 = vmatpush1.msra.mxu0 0.0
  %608 = vmatprep.subr.mxu0 0.0
  %609 = vmatpush1.msra.mxu0 0.0
  %610 = vmatprep.subr.mxu0 0.0
  %611 = vmatpush1.msra.mxu0 0.0
  %612 = vmatprep.subr.mxu0 0.0
  %613 = vmatpush1.msra.mxu0 0.0
  %614 = vmatprep.subr.mxu0 0.0
  %615 = vmatpush1.msra.mxu0 0.0
  %616 = vmatprep.subr.mxu0 0.0
  %617 = vmatpush1.msra.mxu0 0.0
  %618 = vmatprep.subr.mxu0 0.0
  %619 = vmatpush1.msra.mxu0 0.0
  %620 = vmatprep.subr.mxu0 0.0
  %621 = vmatpush1.msra.mxu0 0.0
  %622 = vmatprep.subr.mxu0 0.0
  %623 = vmatpush1.msra.mxu0 0.0
  %624 = vmatprep.subr.mxu0 0.0
  %625 = vmatpush1.msra.mxu0 0.0
  %626 = vmatprep.subr.mxu0 0.0
  %627 = vmatpush1.msra.mxu0 0.0
  %628 = vmatprep.subr.mxu0 0.0
  %629 = vmatpush1.msra.mxu0 0.0
  %630 = vmatprep.subr.mxu0 0.0
  %631 = vmatpush1.msra.mxu0 0.0
  %632 = vmatprep.subr.mxu0 0.0
  %633 = vmatpush1.msra.mxu0 0.0
  %634 = vmatprep.subr.mxu0 0.0
  %635 = vmatpush1.msra.mxu0 0.0
  %636 = vmatprep.subr.mxu0 0.0
  %637 = vmatpush1.msra.mxu0 0.0
  %638 = vmatprep.subr.mxu0 0.0
  %639 = vmatpush1.msra.mxu0 0.0
  %640 = vmatprep.subr.mxu0 0.0
  %641 = vmatpush1.msra.mxu0 0.0
  %642 = vmatprep.subr.mxu0 0.0
  %643 = vmatpush1.msra.mxu0 0.0
  %644 = vmatprep.subr.mxu0 0.0
  %645 = vmatpush1.msra.mxu0 0.0
  %646 = vmatprep.mubr.f32.mxu0 0.0
  %647 = vmatmul.mubr.f32.gmra.mrb[0].mxu0 %v571
  %v648 = vpop.f32.mrb[0].mxu0
  %v649 = vadd.f32 %v553, %v648
  %v650 = vpop.f32.mrb[0].mxu0
  %651 = vmatprep.mubr.f32.mxu0 0.0
  %652 = vmatmul.mubr.f32.gmra.mrb[0].mxu0 %v574
  %v653 = vpop.f32.mrb[0].mxu0
  %v654 = vadd.f32 %v558, %v653
  %v655 = vpop.f32.mrb[0].mxu0
  %656 = vmatprep.mubr.f32.mxu0 0.0
  %657 = vmatmul.mubr.f32.gmra.mrb[0].mxu0 %v577
  %v658 = vpop.f32.mrb[0].mxu0
  %v659 = vadd.f32 %v563, %v658
  %v660 = vpop.f32.mrb[0].mxu0
  %661 = vmatprep.mubr.f32.mxu0 0.0
  %662 = vmatmul.mubr.f32.gmra.mrb[0].mxu0 %v580
  %v663 = vpop.f32.mrb[0].mxu0
  %v664 = vadd.f32 %v568, %v663
  %v665 = vpop.f32.mrb[0].mxu0
  %666 = vdwg.mxu0
  %v667 = vtanh.pop %v649
  %v668 = vtanh.pop %v654
  %v669 = vtanh.pop %v659
  %v670 = vtanh.pop %v664
  %v671 = vld [vmem:[%s11] sm:$0xff]
  %v672 = vld [vmem:[%s11 + $0x8] sm:$0xff]
  %v673 = vld [vmem:[%s12] sm:$0xff]
  %v674 = vld [vmem:[%s12 + $0x8] sm:$0xff]
  %676 = vset.pattern.permute.xlu0 0
  %677 = vperm.xlu0 %676, %v673
  %v678 = vpop.permute.xlu0 %677
  %681 = vset.pattern.permute.xlu0 0
  %682 = vperm.xlu0 %681, %v674
  %v683 = vpop.permute.xlu0 %682
  %v686 = vsel %vm311, %v671, 0
  %v689 = vsel %vm311, %v672, 0
  %691 = vmatprep.subr.mxu0 0.0
  %692 = vmatpush1.msra.mxu0 %v667
  %693 = vmatprep.subr.mxu0 0.0
  %694 = vmatpush1.msra.mxu0 %v668
  %695 = vmatprep.subr.mxu0 0.0
  %696 = vmatpush1.msra.mxu0 %v669
  %697 = vmatprep.subr.mxu0 0.0
  %698 = vmatpush1.msra.mxu0 %v670
  %699 = vmatprep.subr.mxu0 0.0
  %700 = vmatpush1.msra.mxu0 0.0
  %701 = vmatprep.subr.mxu0 0.0
  %702 = vmatpush1.msra.mxu0 0.0
  %703 = vmatprep.subr.mxu0 0.0
  %704 = vmatpush1.msra.mxu0 0.0
  %705 = vmatprep.subr.mxu0 0.0
  %706 = vmatpush1.msra.mxu0 0.0
  %707 = vmatprep.subr.mxu0 0.0
  %708 = vmatpush1.msra.mxu0 0.0
  %709 = vmatprep.subr.mxu0 0.0
  %710 = vmatpush1.msra.mxu0 0.0
  %711 = vmatprep.subr.mxu0 0.0
  %712 = vmatpush1.msra.mxu0 0.0
  %713 = vmatprep.subr.mxu0 0.0
  %714 = vmatpush1.msra.mxu0 0.0
  %715 = vmatprep.subr.mxu0 0.0
  %716 = vmatpush1.msra.mxu0 0.0
  %717 = vmatprep.subr.mxu0 0.0
  %718 = vmatpush1.msra.mxu0 0.0
  %719 = vmatprep.subr.mxu0 0.0
  %720 = vmatpush1.msra.mxu0 0.0
  %721 = vmatprep.subr.mxu0 0.0
  %722 = vmatpush1.msra.mxu0 0.0
  %723 = vmatprep.subr.mxu0 0.0
  %724 = vmatpush1.msra.mxu0 0.0
  %725 = vmatprep.subr.mxu0 0.0
  %726 = vmatpush1.msra.mxu0 0.0
  %727 = vmatprep.subr.mxu0 0.0
  %728 = vmatpush1.msra.mxu0 0.0
  %729 = vmatprep.subr.mxu0 0.0
  %730 = vmatpush1.msra.mxu0 0.0
  %731 = vmatprep.subr.mxu0 0.0
  %732 = vmatpush1.msra.mxu0 0.0
  %733 = vmatprep.subr.mxu0 0.0
  %734 = vmatpush1.msra.mxu0 0.0
  %735 = vmatprep.subr.mxu0 0.0
  %736 = vmatpush1.msra.mxu0 0.0
  %737 = vmatprep.subr.mxu0 0.0
  %738 = vmatpush1.msra.mxu0 0.0
  %739 = vmatprep.subr.mxu0 0.0
  %740 = vmatpush1.msra.mxu0 0.0
  %741 = vmatprep.subr.mxu0 0.0
  %742 = vmatpush1.msra.mxu0 0.0
  %743 = vmatprep.subr.mxu0 0.0
  %744 = vmatpush1.msra.mxu0 0.0
  %745 = vmatprep.subr.mxu0 0.0
  %746 = vmatpush1.msra.mxu0 0.0
  %747 = vmatprep.subr.mxu0 0.0
  %748 = vmatpush1.msra.mxu0 0.0
  %749 = vmatprep.subr.mxu0 0.0
  %750 = vmatpush1.msra.mxu0 0.0
  %751 = vmatprep.subr.mxu0 0.0
  %752 = vmatpush1.msra.mxu0 0.0
  %753 = vmatprep.subr.mxu0 0.0
  %754 = vmatpush1.msra.mxu0 0.0
  %755 = vmatprep.mubr.f32.mxu0 0.0
  %756 = vmatmul.mubr.f32.gmra.mrb[0].mxu0 %v686
  %v757 = vpop.f32.mrb[0].mxu0
  %v758 = vadd.f32 %v678, %v757
  %v759 = vpop.f32.mrb[0].mxu0
  %760 = vmatprep.mubr.f32.mxu0 0.0
  %761 = vmatmul.mubr.f32.gmra.mrb[0].mxu0 %v689
  %v762 = vpop.f32.mrb[0].mxu0
  %v763 = vadd.f32 %v683, %v762
  %v764 = vpop.f32.mrb[0].mxu0
  %765 = vdwg.mxu0
  %v766 = vadd.f32 %v758, %v48
  %v767 = vadd.f32 %v763, %v49
  %768 = vst.msk [vmem:[%s13] sm:$0xff] %vm55, %v766
  %769 = vst.msk [vmem:[%s13 + $0x8] sm:$0xff] %vm55, %v767
  // Predicated region
  $region54: #{tpu_custom_call.1} parent=0 // pred_check
    _
  $region55: #{tpu_custom_call.1} parent=0 // pred_check_branch
    %771 = sbr.rel (0) target = $region57
  $region56: #{tpu_custom_call.1} parent=0 // pred_region
    _
  $region57: #{tpu_custom_call.1} parent=0 // pred_fallthru
    _
  // Predicated region
  $region58: #{tpu_custom_call.1} parent=0 // pred_check
    _
  $region59: #{tpu_custom_call.1} parent=0 // pred_check_branch
    %773 = sbr.rel (0) target = $region61
  $region60: #{tpu_custom_call.1} parent=0 // pred_region
    _
  $region61: #{tpu_custom_call.1} parent=0 // pred_fallthru
    _

</llo_original>
